<compile_context>
chip_gen: v6e
topology: v6e:2x2x1
jax: 0.10.0
libtpu: 0.0.40
codegen_flags: <defaults>
</compile_context>

<pallas_src>
import functools

import jax
import jax.numpy as jnp
from jax.experimental import pallas as pl
from jax.experimental.pallas import tpu as pltpu

LANE = 128
SUBLANE = 8
VMEM_LIMIT = 48 * 1024 * 1024          # <= v7x 64 MiB physical per TensorCore
XW_RESIDENT_BYTES = 4 * 1024 * 1024    # keep XW VMEM-resident if one copy <= 4 MiB


def _round_up(x, m):
    return ((x + m - 1) // m) * m


def _pad2d(a, rows, cols):
    r, c = a.shape
    return jnp.pad(a, ((0, rows - r), (0, cols - c)))


def _pick_tiles(np_):
    """Row tile tm (large; n_i >= 2 when possible for v7x's 2 TCs) and reduction tile tk."""
    tm = np_
    for t in (2048, 1024, 512, 256, 128):
        if np_ % t == 0 and (2 * t <= np_ or t == 128):
            tm = t
            break
    tk = np_
    for t in (512, 256, 128):
        if np_ % t == 0:
            tk = t
            break
    return tm, tk


# ----------------------- feature transform kernel (XW) -----------------------
def _xw_kernel(x_ref, w_ref, o_ref):
    o_ref[...] = jnp.dot(x_ref[...], w_ref[...],
                         preferred_element_type=jnp.float32).astype(o_ref.dtype)


def feature_transform(x_pad, w_pad, *, tm):
    """XW = X_pad @ W_pad, row-tiled.  Hoisted out of the aggregation grid."""
    np_, fp = x_pad.shape
    hout = w_pad.shape[1]
    n_i = np_ // tm
    return pl.pallas_call(
        _xw_kernel,
        out_shape=jax.ShapeDtypeStruct((np_, hout), jnp.bfloat16),
        grid_spec=pltpu.PrefetchScalarGridSpec(
            num_scalar_prefetch=0,
            grid=(n_i,),
            in_specs=[
                pl.BlockSpec((tm, fp), lambda i: (i, 0)),
                pl.BlockSpec((fp, hout), lambda i: (0, 0)),   # W (resident)
            ],
            out_specs=pl.BlockSpec((tm, hout), lambda i: (i, 0)),
        ),
        compiler_params=pltpu.CompilerParams(
            dimension_semantics=("parallel",),
            vmem_limit_bytes=VMEM_LIMIT,
        ),
        cost_estimate=pl.CostEstimate(
            flops=int(2 * np_ * fp * hout),
            transcendentals=0,
            bytes_accessed=int(x_pad.size * 2 + w_pad.size * 2 + np_ * hout * 2),
        ),
    )(x_pad, w_pad)


# ----------------------- GCN aggregation kernel (layer 1) --------------------
def _gcn_agg_kernel(a_ref, xw_ref, b_ref, out_ref, acc_ref, *, xw_resident, tk):
    """out_tile = relu( sum_k A[i,k] @ XW[k] + b ), f32 VMEM accumulator."""
    k = pl.program_id(1)

    @pl.when(k == 0)
    def _():
        acc_ref[...] = jnp.zeros_like(acc_ref)

    if xw_resident:
        xw = xw_ref[pl.ds(pl.multiple_of(k * tk, tk), tk), :]
    else:
        xw = xw_ref[...]
    acc_ref[...] += jnp.dot(a_ref[...], xw, preferred_element_type=jnp.float32)

    @pl.when(k == pl.num_programs(1) - 1)
    def _():
        out_ref[...] = jnp.maximum(acc_ref[...] + b_ref[...], 0.0).astype(out_ref.dtype)


def gcn_aggregate(a_pad, xw, b_pad, *, tm, tk):
    np_ = a_pad.shape[0]
    hout = xw.shape[1]
    n_i, n_k = np_ // tm, np_ // tk
    xw_resident = xw.size * 2 <= XW_RESIDENT_BYTES

    if xw_resident:
        xw_spec = pl.BlockSpec((np_, hout), lambda i, k: (0, 0))   # fully resident
        xw_bytes = xw.size * 2
    else:
        xw_spec = pl.BlockSpec((tk, hout), lambda i, k: (k, 0))    # streamed per k
        xw_bytes = n_i * xw.size * 2                               # re-read per row tile

    kernel = functools.partial(_gcn_agg_kernel, xw_resident=xw_resident, tk=tk)
    return pl.pallas_call(
        kernel,
        out_shape=jax.ShapeDtypeStruct((np_, hout), jnp.bfloat16),
        grid_spec=pltpu.PrefetchScalarGridSpec(
            num_scalar_prefetch=0,
            grid=(n_i, n_k),
            in_specs=[
                pl.BlockSpec((tm, tk), lambda i, k: (i, k)),    # A tile (dominant stream)
                xw_spec,                                        # XW (resident or streamed)
                pl.BlockSpec((1, hout), lambda i, k: (0, 0)),   # bias (resident)
            ],
            out_specs=pl.BlockSpec((tm, hout), lambda i, k: (i, 0)),
            scratch_shapes=[pltpu.VMEM((tm, hout), jnp.float32)],
        ),
        compiler_params=pltpu.CompilerParams(
            dimension_semantics=("parallel", "arbitrary"),
            vmem_limit_bytes=VMEM_LIMIT,
        ),
        cost_estimate=pl.CostEstimate(
            flops=int(2 * np_ * np_ * hout),
            transcendentals=0,
            bytes_accessed=int(a_pad.size * 2 + xw_bytes + b_pad.size * 4
                               + np_ * hout * 2),
        ),
    )(a_pad, xw, b_pad)


# --------------- GCN aggregation fused with mean-pool (layer 2) --------------
def _gcn_agg_pool_kernel(a_ref, xw_ref, b_ref, p_ref, pooled_ref, acc_ref,
                         *, xw_resident, tk):
    """pooled_partial[i] = P[:, rows(i)] @ relu( sum_k A[i,k] @ XW[k] + b )."""
    k = pl.program_id(1)

    @pl.when(k == 0)
    def _():
        acc_ref[...] = jnp.zeros_like(acc_ref)

    if xw_resident:
        xw = xw_ref[pl.ds(pl.multiple_of(k * tk, tk), tk), :]
    else:
        xw = xw_ref[...]
    acc_ref[...] += jnp.dot(a_ref[...], xw, preferred_element_type=jnp.float32)

    @pl.when(k == pl.num_programs(1) - 1)
    def _():
        h = jnp.maximum(acc_ref[...] + b_ref[...], 0.0)          # (tm, hout) f32
        # Padded node rows of h hold relu(bias), not zero; they are masked here
        # because P's padded columns are exactly zero.
        pooled_ref[...] = jnp.dot(p_ref[...], h.astype(p_ref.dtype),
                                  preferred_element_type=jnp.float32)


def gcn_aggregate_pool(a_pad, xw, b_pad, p_pad, *, tm, tk):
    """Second GCNConv fused with global_mean_pool.  Returns (Gp, Hout) f32;
    h2 is never written to HBM — only per-row-tile pooled partials are."""
    np_ = a_pad.shape[0]
    hout = xw.shape[1]
    gp = p_pad.shape[0]
    n_i, n_k = np_ // tm, np_ // tk
    xw_resident = xw.size * 2 <= XW_RESIDENT_BYTES

    if xw_resident:
        xw_spec = pl.BlockSpec((np_, hout), lambda i, k: (0, 0))
        xw_bytes = xw.size * 2
    else:
        xw_spec = pl.BlockSpec((tk, hout), lambda i, k: (k, 0))
        xw_bytes = n_i * xw.size * 2

    kernel = functools.partial(_gcn_agg_pool_kernel, xw_resident=xw_resident, tk=tk)
    partials = pl.pallas_call(
        kernel,
        out_shape=jax.ShapeDtypeStruct((n_i * gp, hout), jnp.float32),
        grid_spec=pltpu.PrefetchScalarGridSpec(
            num_scalar_prefetch=0,
            grid=(n_i, n_k),
            in_specs=[
                pl.BlockSpec((tm, tk), lambda i, k: (i, k)),    # A tile
                xw_spec,                                        # XW
                pl.BlockSpec((1, hout), lambda i, k: (0, 0)),   # bias (resident)
                pl.BlockSpec((gp, tm), lambda i, k: (0, i)),    # P columns for row tile i
            ],
            out_specs=pl.BlockSpec((gp, hout), lambda i, k: (i, 0)),
            scratch_shapes=[pltpu.VMEM((tm, hout), jnp.float32)],
        ),
        compiler_params=pltpu.CompilerParams(
            dimension_semantics=("parallel", "arbitrary"),
            vmem_limit_bytes=VMEM_LIMIT,
        ),
        cost_estimate=pl.CostEstimate(
            flops=int(2 * np_ * np_ * hout + 2 * np_ * gp * hout),
            transcendentals=0,
            bytes_accessed=int(a_pad.size * 2 + xw_bytes + b_pad.size * 4
                               + p_pad.size * 2 + n_i * gp * hout * 4),
        ),
    )(a_pad, xw, b_pad, p_pad)
    # Tiny (n_i, Gp, Hout) reduction done in XLA.
    return partials.reshape(n_i, gp, hout).sum(axis=0)


# ----------------------------- MLP head (tiny) --------------------------------
def _head_kernel(pooled_ref, wl1_ref, bl1_ref, wl2_ref, bl2_ref, out_ref):
    z = jnp.dot(pooled_ref[...].astype(wl1_ref.dtype), wl1_ref[...],
                preferred_element_type=jnp.float32) + bl1_ref[...]
    z = jnp.maximum(z, 0.0)
    # Dropout(p=0.05) is identity in eval/inference mode.
    out_ref[...] = jnp.dot(z.astype(wl2_ref.dtype), wl2_ref[...],
                           preferred_element_type=jnp.float32) + bl2_ref[...]


def mlp_head(pooled, wl1_p, bl1_p, wl2_p, bl2_p):
    gp = pooled.shape[0]
    cp = wl2_p.shape[1]
    vmem = pltpu.MemorySpace.VMEM
    return pl.pallas_call(
        _head_kernel,
        out_shape=jax.ShapeDtypeStruct((gp, cp), jnp.float32),
        in_specs=[pl.BlockSpec(memory_space=vmem) for _ in range(5)],
        out_specs=pl.BlockSpec(memory_space=vmem),
        compiler_params=pltpu.CompilerParams(vmem_limit_bytes=VMEM_LIMIT),
    )(pooled, wl1_p, bl1_p, wl2_p, bl2_p)


# ------------------------------ glue (JAX) ------------------------------------
def build_norm_adj_padded(edge_index, num_nodes, np_, dtype=jnp.bfloat16):
    """Dense D^{-1/2}(A + I)D^{-1/2} (PyG GCNConv default), built directly at the
    padded shape in the kernel storage dtype (no intermediate f32 Np x Np array)."""
    src, dst = edge_index[0], edge_index[1]
    loop = jnp.arange(num_nodes, dtype=edge_index.dtype)
    src = jnp.concatenate([src, loop])
    dst = jnp.concatenate([dst, loop])
    deg = jnp.zeros((num_nodes,), jnp.float32).at[dst].add(1.0)
    dinv = jnp.where(deg > 0, 1.0 / jnp.sqrt(deg), 0.0)
    w = (dinv[dst] * dinv[src]).astype(dtype)
    # message flows src -> dst:  A[dst, src] = norm; padded rows/cols stay zero.
    return jnp.zeros((np_, np_), dtype).at[dst, src].add(w)


def build_mean_pool_padded(batch, num_graphs, gp, np_, dtype=jnp.bfloat16):
    """Row-normalized one-hot pooling matrix, built at padded shape in bf16."""
    n = batch.shape[0]
    batch_pad = jnp.pad(batch, (0, np_ - n), constant_values=-1)  # padded nodes -> no graph
    onehot = (batch_pad[None, :] ==
              jnp.arange(gp, dtype=batch.dtype)[:, None]).astype(jnp.float32)
    counts = jnp.maximum(onehot.sum(axis=1, keepdims=True), 1.0)
    return (onehot / counts).astype(dtype)


def simple_gnn_forward(x, edge_index, batch, params, num_graphs, num_classes):
    n, f_in = x.shape
    w1, b1, w2, b2, wl1, bl1, wl2, bl2 = params
    hidden, out_dim = w1.shape[1], w2.shape[1]

    # Lane/sublane-friendly padded sizes.
    np_ = _round_up(n, LANE)
    fp = _round_up(f_in, LANE)
    hp = _round_up(hidden, LANE)
    op = _round_up(out_dim, LANE)
    cp = _round_up(num_classes, LANE)
    gp = _round_up(num_graphs, SUBLANE)

    tm, tk = _pick_tiles(np_)

    # Graph-structure matrices, built directly padded + bf16.
    a_pad = build_norm_adj_padded(edge_index, n, np_)              # (Np, Np) bf16
    p_pad = build_mean_pool_padded(batch, num_graphs, gp, np_)     # (Gp, Np) bf16

    # bf16 data path, f32 biases (added to the f32 accumulator).
    x_pad = _pad2d(x, np_, fp).astype(jnp.bfloat16)
    w1_p = _pad2d(w1, fp, hp).astype(jnp.bfloat16)
    b1_p = _pad2d(b1.reshape(1, -1), 1, hp)
    w2_p = _pad2d(w2, hp, op).astype(jnp.bfloat16)
    b2_p = _pad2d(b2.reshape(1, -1), 1, op)
    wl1_p = _pad2d(wl1, op, op).astype(jnp.bfloat16)
    bl1_p = _pad2d(bl1.reshape(1, -1), 1, op)
    wl2_p = _pad2d(wl2, op, cp).astype(jnp.bfloat16)
    bl2_p = _pad2d(bl2.reshape(1, -1), 1, cp)

    # Layer 1:  h1 = relu(A @ (X @ W1) + b1)   (X@W1 hoisted out of the grid).
    xw1 = feature_transform(x_pad, w1_p, tm=tm)                    # (Np, Hp) bf16
    h1 = gcn_aggregate(a_pad, xw1, b1_p, tm=tm, tk=tk)             # (Np, Hp) bf16
    # NOTE: padded rows of h1 hold relu(b1), not zero; they are masked downstream
    # because A's (and P's) padded columns are zero.

    # Layer 2 fused with global_mean_pool: h2 never touches HBM.
    xw2 = feature_transform(h1, w2_p, tm=tm)                       # (Np, Op) bf16
    pooled = gcn_aggregate_pool(a_pad, xw2, b2_p, p_pad, tm=tm, tk=tk)  # (Gp, Op) f32

    # MLP head (tiny, grid-less).
    out_pad = mlp_head(pooled, wl1_p, bl1_p, wl2_p, bl2_p)         # (Gp, Cp) f32
    return out_pad[:num_graphs, :num_classes]


# ------------------------------- main -----------------------------------------
if __name__ == "__main__":
    # Small shapes consistent with the module:
    #   N=16 nodes split across 2 graphs, input_dim=8, hidden_dim=32,
    #   output_dim=32, num_classes=4.
    N, INPUT_DIM, HIDDEN_DIM, OUTPUT_DIM, NUM_CLASSES, NUM_GRAPHS = 16, 8, 32, 32, 4, 2

    key = jax.random.PRNGKey(0)
    keys = jax.random.split(key, 9)

    w1 = 0.1 * jax.random.normal(keys[0], (INPUT_DIM, HIDDEN_DIM), jnp.float32)
    b1 = 0.1 * jax.random.normal(keys[1], (HIDDEN_DIM,), jnp.float32)
    w2 = 0.1 * jax.random.normal(keys[2], (HIDDEN_DIM, OUTPUT_DIM), jnp.float32)
    b2 = 0.1 * jax.random.normal(keys[3], (OUTPUT_DIM,), jnp.float32)
    wl1 = 0.1 * jax.random.normal(keys[4], (OUTPUT_DIM, OUTPUT_DIM), jnp.float32)
    bl1 = 0.1 * jax.random.normal(keys[5], (OUTPUT_DIM,), jnp.float32)
    wl2 = 0.1 * jax.random.normal(keys[6], (OUTPUT_DIM, NUM_CLASSES), jnp.float32)
    bl2 = 0.1 * jax.random.normal(keys[7], (NUM_CLASSES,), jnp.float32)
    params = (w1, b1, w2, b2, wl1, bl1, wl2, bl2)

    x = jax.random.normal(keys[8], (N, INPUT_DIM), jnp.float32)

    # Two graphs of 8 nodes each; undirected ring within each graph.
    per = N // NUM_GRAPHS
    src_list, dst_list = [], []
    for g in range(NUM_GRAPHS):
        base = g * per
        for i in range(per):
            a, b = base + i, base + (i + 1) % per
            src_list += [a, b]
            dst_list += [b, a]
    edge_index = jnp.array([src_list, dst_list], dtype=jnp.int32)
    batch = jnp.repeat(jnp.arange(NUM_GRAPHS, dtype=jnp.int32), per)

    out = simple_gnn_forward(x, edge_index, batch, params, NUM_GRAPHS, NUM_CLASSES)
    jax.block_until_ready(out)
    assert out.shape == (NUM_GRAPHS, NUM_CLASSES)
    print("KERNEL_OK")
</pallas_src>

<mosaic_0001>
module attributes {stable_mosaic.version = 11 : i64} {
  func.func @_xw_kernel(%arg0: i32, %arg1: memref<128x128xbf16, #tpu.memory_space<vmem>>, %arg2: memref<128x128xbf16, #tpu.memory_space<vmem>>, %arg3: memref<128x128xbf16, #tpu.memory_space<vmem>>) attributes {dimension_semantics = [#tpu.dimension_semantics<parallel>], iteration_bounds = array<i64: 1>, scalar_prefetch = 0 : i64, scratch_operands = 0 : i64, tpu.core_type = #tpu.core_type<tc>, window_params = [{transform_indices = @transform_0, window_bounds = array<i64: 128, 128>}, {pipeline_mode = #tpu.pipeline_mode<synchronous>, transform_indices = @transform_1, window_bounds = array<i64: 128, 128>}, {transform_indices = @transform_2, window_bounds = array<i64: 128, 128>}]} {
    %c0 = arith.constant 0 : index
    %c0_0 = arith.constant 0 : index
    %0 = vector.load %arg1[%c0, %c0_0] : memref<128x128xbf16, #tpu.memory_space<vmem>>, vector<128x128xbf16>
    %c0_1 = arith.constant 0 : index
    %c0_2 = arith.constant 0 : index
    %1 = vector.load %arg2[%c0_1, %c0_2] : memref<128x128xbf16, #tpu.memory_space<vmem>>, vector<128x128xbf16>
    %cst = arith.constant dense<0.000000e+00> : vector<128x128xf32>
    %2 = tpu.matmul %0, %1, %cst {dimension_numbers = #tpu.dot_dimension_numbers<[1], [0], [0], [1], [0, 0, 1, 1], [], []>} : vector<128x128xbf16>, vector<128x128xbf16>, vector<128x128xf32> -> vector<128x128xf32>
    %3 = arith.truncf %2 : vector<128x128xf32> to vector<128x128xbf16>
    %c0_3 = arith.constant 0 : index
    %c0_4 = arith.constant 0 : index
    %4 = vector.load %arg3[%c0_3, %c0_4] : memref<128x128xbf16, #tpu.memory_space<vmem>>, vector<128x128xbf16>
    tpu.vector_store %arg3[%c0_3, %c0_4], %3 {strides = array<i32>} : memref<128x128xbf16, #tpu.memory_space<vmem>>, vector<128x128xbf16>,
    return
  }
  func.func @transform_0(%arg0: i32) -> (i32, i32) {
    %c0_i32 = arith.constant 0 : i32
    %c0_i32_0 = arith.constant 0 : i32
    return %arg0, %c0_i32 : i32, i32
  }
  func.func @transform_1(%arg0: i32) -> (i32, i32) {
    %c0_i32 = arith.constant 0 : i32
    %c0_i32_0 = arith.constant 0 : i32
    %c0_i32_1 = arith.constant 0 : i32
    return %c0_i32, %c0_i32_0 : i32, i32
  }
  func.func @transform_2(%arg0: i32) -> (i32, i32) {
    %c0_i32 = arith.constant 0 : i32
    %c0_i32_0 = arith.constant 0 : i32
    return %arg0, %c0_i32 : i32, i32
  }
}

</mosaic_0001>

<llo_original>
// kernel: tpu_custom_call.1
$region0: #{tpu_custom_call.1}
  #allocation0 [shape = 'u32[]', space=smem, size = 0x4, offset = 0x4, fixed_abs, tag = 'smem constant byte address 0x4 - core index']
  #allocation1 [shape = 'u32[144,128]{1,0:T(1,128)}', space=vmem, size = 0x12000, scoped, tag = 'internal scratch']
  %s0 = inlined_call_operand.hbm [shape: bf16[128,128], index: 0, kind: input, shape index: {}]
  %s1 = inlined_call_operand.hbm [shape: bf16[128,128], index: 1, kind: input, shape index: {}]
  %s2 = inlined_call_operand.hbm [shape: bf16[128,128], index: 2, kind: output, shape index: {}]
  %s3 = sld [smem:[#allocation0]]
  $region26: #{tpu_custom_call.1} parent=0
    _
  %s5 = ssub.s32 1, %s3
  %s6 = scalar_select 0, %s5, %s3
  $region1: #{tpu_custom_call.1} parent=0
    #allocation2 [shape = 'u8[32768]{0}', space=vmem, size = 0x8000, scoped, tag = 'input window, operand 0, single buffered']
    #allocation3 [shape = 's32[1]{0}', space=sflag, size = 0x4, scoped, tag = 'scoped memory for tpu_custom_call.1']
    #allocation4 [shape = 's32[1]{0}', space=sflag, size = 0x4, scoped, tag = 'scoped memory for tpu_custom_call.1']
    #allocation5 [shape = 'u8[32768]{0}', space=vmem, size = 0x8000, scoped, tag = 'input window, operand 1, single buffered']
    #allocation6 [shape = 's32[1]{0}', space=sflag, size = 0x4, scoped, tag = 'scoped memory for tpu_custom_call.1']
    #allocation7 [shape = 'u8[32768]{0}', space=vmem, size = 0x8000, scoped, tag = 'output window, operand 0, single buffered']
    %7 = vsyncpa [#allocation3], 0
    %8 = vsyncpa [#allocation6], 0
    %9 = vsyncpa [#allocation4], 0
    // Predicated region
    $region2: #{tpu_custom_call.1} parent=1 // pred_check
      _
    $region3: #{tpu_custom_call.1} parent=1 // pred_check_branch
      %11 = sbr.rel (0) target = $region5
    $region4: #{tpu_custom_call.1} parent=1 // pred_region
      %s13 = ssub.s32 1024, 1024
      %14 = vsyncadd [#allocation3], %s13
      %s15 = sshll.u32 [#allocation2], 4
      %s16 = int_to_ptr.vmem [resolvable:$true] %s15
      %21 = dma.hbm_to_vmem [thread:$0]  %s0, 1024, %s16, [#allocation3], 64, 64, 4
    $region5: #{tpu_custom_call.1} parent=1 // pred_fallthru
      _
    // Predicated region
    $region6: #{tpu_custom_call.1} parent=1 // pred_check
      _
    $region7: #{tpu_custom_call.1} parent=1 // pred_check_branch
      %23 = sbr.rel (0) target = $region9
    $region8: #{tpu_custom_call.1} parent=1 // pred_region
      %s25 = ssub.s32 1024, 1024
      %26 = vsyncadd [#allocation6], %s25
      %s27 = sshll.u32 [#allocation5], 4
      %s28 = int_to_ptr.vmem [resolvable:$true] %s27
      %33 = dma.hbm_to_vmem [thread:$0]  %s1, 1024, %s28, [#allocation6], 64, 64, 4
    $region9: #{tpu_custom_call.1} parent=1 // pred_fallthru
      _
    // Predicated region
    $region10: #{tpu_custom_call.1} parent=1 // pred_check
      _
    $region11: #{tpu_custom_call.1} parent=1 // pred_check_branch
      %35 = sbr.rel (0) target = $region13
    $region12: #{tpu_custom_call.1} parent=1 // pred_region
      %36 = dma.done [#allocation3], 1024
    $region13: #{tpu_custom_call.1} parent=1 // pred_fallthru
      _
    // Predicated region
    $region14: #{tpu_custom_call.1} parent=1 // pred_check
      _
    $region15: #{tpu_custom_call.1} parent=1 // pred_check_branch
      %38 = sbr.rel (0) target = $region17
    $region16: #{tpu_custom_call.1} parent=1 // pred_region
      %39 = dma.done [#allocation6], 1024
    $region17: #{tpu_custom_call.1} parent=1 // pred_fallthru
      _
    %v41 = vld [vmem:[#allocation2] sm:$0xf]
    %v42 = vld [vmem:[#allocation2 + $0x4] sm:$0xf]
    %v43 = vld [vmem:[#allocation2 + $0x8] sm:$0xf]
    %v44 = vld [vmem:[#allocation2 + $0xc] sm:$0xf]
    %v45 = vld [vmem:[#allocation2 + $0x10] sm:$0xf]
    %v46 = vld [vmem:[#allocation2 + $0x14] sm:$0xf]
    %v47 = vld [vmem:[#allocation2 + $0x18] sm:$0xf]
    %v48 = vld [vmem:[#allocation2 + $0x1c] sm:$0xf]
    %v49 = vld [vmem:[#allocation2 + $0x20] sm:$0xf]
    %v50 = vld [vmem:[#allocation2 + $0x24] sm:$0xf]
    %v51 = vld [vmem:[#allocation2 + $0x28] sm:$0xf]
    %v52 = vld [vmem:[#allocation2 + $0x2c] sm:$0xf]
    %v53 = vld [vmem:[#allocation2 + $0x30] sm:$0xf]
    %v54 = vld [vmem:[#allocation2 + $0x34] sm:$0xf]
    %v55 = vld [vmem:[#allocation2 + $0x38] sm:$0xf]
    %v56 = vld [vmem:[#allocation2 + $0x3c] sm:$0xf]
    %v57 = vld [vmem:[#allocation5] sm:$0xf]
    %v58 = vld [vmem:[#allocation5 + $0x4] sm:$0xf]
    %v59 = vld [vmem:[#allocation5 + $0x8] sm:$0xf]
    %v60 = vld [vmem:[#allocation5 + $0xc] sm:$0xf]
    %v61 = vld [vmem:[#allocation5 + $0x10] sm:$0xf]
    %v62 = vld [vmem:[#allocation5 + $0x14] sm:$0xf]
    %v63 = vld [vmem:[#allocation5 + $0x18] sm:$0xf]
    %v64 = vld [vmem:[#allocation5 + $0x1c] sm:$0xf]
    %v65 = vld [vmem:[#allocation5 + $0x20] sm:$0xf]
    %v66 = vld [vmem:[#allocation5 + $0x24] sm:$0xf]
    %v67 = vld [vmem:[#allocation5 + $0x28] sm:$0xf]
    %v68 = vld [vmem:[#allocation5 + $0x2c] sm:$0xf]
    %v69 = vld [vmem:[#allocation5 + $0x30] sm:$0xf]
    %v70 = vld [vmem:[#allocation5 + $0x34] sm:$0xf]
    %v71 = vld [vmem:[#allocation5 + $0x38] sm:$0xf]
    %v72 = vld [vmem:[#allocation5 + $0x3c] sm:$0xf]
    %v89 = vunpack.c.l.b16 %v41
    %v90 = vunpack.c.l.b16 %v42
    %v91 = vunpack.c.l.b16 %v43
    %v92 = vunpack.c.l.b16 %v44
    %v93 = vunpack.c.l.b16 %v45
    %v94 = vunpack.c.l.b16 %v46
    %v95 = vunpack.c.l.b16 %v47
    %v96 = vunpack.c.l.b16 %v48
    %v97 = vunpack.c.l.b16 %v49
    %v98 = vunpack.c.l.b16 %v50
    %v99 = vunpack.c.l.b16 %v51
    %v100 = vunpack.c.l.b16 %v52
    %v101 = vunpack.c.l.b16 %v53
    %v102 = vunpack.c.l.b16 %v54
    %v103 = vunpack.c.l.b16 %v55
    %v104 = vunpack.c.l.b16 %v56
    %v105 = vpack.c.b16 %v90, %v89
    %v106 = vpack.c.b16 %v92, %v91
    %v107 = vpack.c.b16 %v94, %v93
    %v108 = vpack.c.b16 %v96, %v95
    %v109 = vpack.c.b16 %v98, %v97
    %v110 = vpack.c.b16 %v100, %v99
    %v111 = vpack.c.b16 %v102, %v101
    %v112 = vpack.c.b16 %v104, %v103
    %v137 = vunpack.c.l.b16 %v57
    %v138 = vunpack.c.l.b16 %v58
    %v139 = vunpack.c.l.b16 %v59
    %v140 = vunpack.c.l.b16 %v60
    %v141 = vunpack.c.l.b16 %v61
    %v142 = vunpack.c.l.b16 %v62
    %v143 = vunpack.c.l.b16 %v63
    %v144 = vunpack.c.l.b16 %v64
    %v145 = vunpack.c.l.b16 %v65
    %v146 = vunpack.c.l.b16 %v66
    %v147 = vunpack.c.l.b16 %v67
    %v148 = vunpack.c.l.b16 %v68
    %v149 = vunpack.c.l.b16 %v69
    %v150 = vunpack.c.l.b16 %v70
    %v151 = vunpack.c.l.b16 %v71
    %v152 = vunpack.c.l.b16 %v72
    %v153 = vpack.c.b16 %v138, %v137
    %v154 = vpack.c.b16 %v140, %v139
    %v155 = vpack.c.b16 %v142, %v141
    %v156 = vpack.c.b16 %v144, %v143
    %v157 = vpack.c.b16 %v146, %v145
    %v158 = vpack.c.b16 %v148, %v147
    %v159 = vpack.c.b16 %v150, %v149
    %v160 = vpack.c.b16 %v152, %v151
    %169 = vmatprep.subr.bf16.mxu0 0
    %170 = vmatpush1.bf16.msra.mxu0 %v160
    %171 = vmatprep.subr.bf16.mxu0 0
    %172 = vmatpush1.bf16.msra.mxu0 %v159
    %173 = vmatprep.subr.bf16.mxu0 0
    %174 = vmatpush1.bf16.msra.mxu0 %v158
    %175 = vmatprep.subr.bf16.mxu0 0
    %176 = vmatpush1.bf16.msra.mxu0 %v157
    %177 = vmatprep.subr.bf16.mxu0 0
    %178 = vmatpush1.bf16.msra.mxu0 %v156
    %179 = vmatprep.subr.bf16.mxu0 0
    %180 = vmatpush1.bf16.msra.mxu0 %v155
    %181 = vmatprep.subr.bf16.mxu0 0
    %182 = vmatpush1.bf16.msra.mxu0 %v154
    %183 = vmatprep.subr.bf16.mxu0 0
    %184 = vmatpush1.bf16.msra.mxu0 %v153
    %185 = vmatprep.subr.bf16.mxu0 0
    %186 = vmatpush2.bf16.msra.mxu0 0
    %187 = vmatprep.subr.bf16.mxu0 0
    %188 = vmatpush2.bf16.msra.mxu0 0
    %189 = vmatprep.subr.bf16.mxu0 0
    %190 = vmatpush2.bf16.msra.mxu0 0
    %191 = vmatprep.subr.bf16.mxu0 0
    %192 = vmatpush2.bf16.msra.mxu0 0
    %193 = vmatprep.subr.bf16.mxu0 0
    %194 = vmatpush2.bf16.msra.mxu0 0
    %195 = vmatprep.subr.bf16.mxu0 0
    %196 = vmatpush2.bf16.msra.mxu0 0
    %197 = vmatprep.subr.bf16.mxu0 0
    %198 = vmatpush2.bf16.msra.mxu0 0
    %199 = vmatprep.subr.bf16.mxu0 0
    %200 = vmatpush2.bf16.msra.mxu0 0
    %201 = vmatprep.mubr.bf16.mxu0 0
    %202 = vmatmul.mubr.bf16.gmra.mxu0 %v105
    %v203 = vpop.f32.mrf.mxu0
    %v204 = vadd.f32 0.0, %v203
    %v205 = vpop.f32.mrf.mxu0
    %v206 = vpop.f32.mrf.mxu0
    %v207 = vadd.f32 0.0, %v206
    %v208 = vpop.f32.mrf.mxu0
    %209 = vmatprep.mubr.bf16.mxu0 0
    %210 = vmatmul.mubr.bf16.gmra.mxu0 %v106
    %v211 = vpop.f32.mrf.mxu0
    %v212 = vadd.f32 0.0, %v211
    %v213 = vpop.f32.mrf.mxu0
    %v214 = vpop.f32.mrf.mxu0
    %v215 = vadd.f32 0.0, %v214
    %v216 = vpop.f32.mrf.mxu0
    %217 = vmatprep.mubr.bf16.mxu0 0
    %218 = vmatmul.mubr.bf16.gmra.mxu0 %v107
    %v219 = vpop.f32.mrf.mxu0
    %v220 = vadd.f32 0.0, %v219
    %v221 = vpop.f32.mrf.mxu0
    %v222 = vpop.f32.mrf.mxu0
    %v223 = vadd.f32 0.0, %v222
    %v224 = vpop.f32.mrf.mxu0
    %225 = vmatprep.mubr.bf16.mxu0 0
    %226 = vmatmul.mubr.bf16.gmra.mxu0 %v108
    %v227 = vpop.f32.mrf.mxu0
    %v228 = vadd.f32 0.0, %v227
    %v229 = vpop.f32.mrf.mxu0
    %v230 = vpop.f32.mrf.mxu0
    %v231 = vadd.f32 0.0, %v230
    %v232 = vpop.f32.mrf.mxu0
    %233 = vmatprep.mubr.bf16.mxu0 0
    %234 = vmatmul.mubr.bf16.gmra.mxu0 %v109
    %v235 = vpop.f32.mrf.mxu0
    %v236 = vadd.f32 0.0, %v235
    %v237 = vpop.f32.mrf.mxu0
    %v238 = vpop.f32.mrf.mxu0
    %v239 = vadd.f32 0.0, %v238
    %v240 = vpop.f32.mrf.mxu0
    %241 = vmatprep.mubr.bf16.mxu0 0
    %242 = vmatmul.mubr.bf16.gmra.mxu0 %v110
    %v243 = vpop.f32.mrf.mxu0
    %v244 = vadd.f32 0.0, %v243
    %v245 = vpop.f32.mrf.mxu0
    %v246 = vpop.f32.mrf.mxu0
    %v247 = vadd.f32 0.0, %v246
    %v248 = vpop.f32.mrf.mxu0
    %249 = vmatprep.mubr.bf16.mxu0 0
    %250 = vmatmul.mubr.bf16.gmra.mxu0 %v111
    %v251 = vpop.f32.mrf.mxu0
    %v252 = vadd.f32 0.0, %v251
    %v253 = vpop.f32.mrf.mxu0
    %v254 = vpop.f32.mrf.mxu0
    %v255 = vadd.f32 0.0, %v254
    %v256 = vpop.f32.mrf.mxu0
    %257 = vmatprep.mubr.bf16.mxu0 0
    %258 = vmatmul.mubr.bf16.gmra.mxu0 %v112
    %v259 = vpop.f32.mrf.mxu0
    %v260 = vadd.f32 0.0, %v259
    %v261 = vpop.f32.mrf.mxu0
    %v262 = vpop.f32.mrf.mxu0
    %v263 = vadd.f32 0.0, %v262
    %v264 = vpop.f32.mrf.mxu0
    %265 = vdwg.mxu0
    %v266 = vpack.c.bf16 %v207, %v204
    %v267 = vpack.c.bf16 %v215, %v212
    %v268 = vpack.c.bf16 %v223, %v220
    %v269 = vpack.c.bf16 %v231, %v228
    %v270 = vpack.c.bf16 %v239, %v236
    %v271 = vpack.c.bf16 %v247, %v244
    %v272 = vpack.c.bf16 %v255, %v252
    %v273 = vpack.c.bf16 %v263, %v260
    %v282 = vunpack.c.l.b16 %v266
    %v283 = vunpack.c.h.b16 %v266
    %v284 = vunpack.c.l.b16 %v267
    %v285 = vunpack.c.h.b16 %v267
    %v286 = vunpack.c.l.b16 %v268
    %v287 = vunpack.c.h.b16 %v268
    %v288 = vunpack.c.l.b16 %v269
    %v289 = vunpack.c.h.b16 %v269
    %v290 = vunpack.c.l.b16 %v270
    %v291 = vunpack.c.h.b16 %v270
    %v292 = vunpack.c.l.b16 %v271
    %v293 = vunpack.c.h.b16 %v271
    %v294 = vunpack.c.l.b16 %v272
    %v295 = vunpack.c.h.b16 %v272
    %v296 = vunpack.c.l.b16 %v273
    %v297 = vunpack.c.h.b16 %v273
    %v298 = vpack.c.b16 %v282, %v282
    %v299 = vpack.c.b16 %v283, %v283
    %v300 = vpack.c.b16 %v284, %v284
    %v301 = vpack.c.b16 %v285, %v285
    %v302 = vpack.c.b16 %v286, %v286
    %v303 = vpack.c.b16 %v287, %v287
    %v304 = vpack.c.b16 %v288, %v288
    %v305 = vpack.c.b16 %v289, %v289
    %v306 = vpack.c.b16 %v290, %v290
    %v307 = vpack.c.b16 %v291, %v291
    %v308 = vpack.c.b16 %v292, %v292
    %v309 = vpack.c.b16 %v293, %v293
    %v310 = vpack.c.b16 %v294, %v294
    %v311 = vpack.c.b16 %v295, %v295
    %v312 = vpack.c.b16 %v296, %v296
    %v313 = vpack.c.b16 %v297, %v297
    %330 = vst [vmem:[#allocation7] sm:$0xf] %v298
    %331 = vst [vmem:[#allocation7 + $0x4] sm:$0xf] %v299
    %332 = vst [vmem:[#allocation7 + $0x8] sm:$0xf] %v300
    %333 = vst [vmem:[#allocation7 + $0xc] sm:$0xf] %v301
    %334 = vst [vmem:[#allocation7 + $0x10] sm:$0xf] %v302
    %335 = vst [vmem:[#allocation7 + $0x14] sm:$0xf] %v303
    %336 = vst [vmem:[#allocation7 + $0x18] sm:$0xf] %v304
    %337 = vst [vmem:[#allocation7 + $0x1c] sm:$0xf] %v305
    %338 = vst [vmem:[#allocation7 + $0x20] sm:$0xf] %v306
    %339 = vst [vmem:[#allocation7 + $0x24] sm:$0xf] %v307
    %340 = vst [vmem:[#allocation7 + $0x28] sm:$0xf] %v308
    %341 = vst [vmem:[#allocation7 + $0x2c] sm:$0xf] %v309
    %342 = vst [vmem:[#allocation7 + $0x30] sm:$0xf] %v310
    %343 = vst [vmem:[#allocation7 + $0x34] sm:$0xf] %v311
    %344 = vst [vmem:[#allocation7 + $0x38] sm:$0xf] %v312
    %345 = vst [vmem:[#allocation7 + $0x3c] sm:$0xf] %v313
    // Predicated region
    $region18: #{tpu_custom_call.1} parent=1 // pred_check
      _
    $region19: #{tpu_custom_call.1} parent=1 // pred_check_branch
      %347 = sbr.rel (0) target = $region21
    $region20: #{tpu_custom_call.1} parent=1 // pred_region
      %s349 = ssub.s32 1024, 1024
      %350 = vsyncadd [#allocation4], %s349
      %s351 = sshll.u32 [#allocation7], 4
      %s352 = int_to_ptr.vmem [resolvable:$true] %s351
      %357 = dma.vmem_to_hbm [thread:$0]  %s352, 1024, %s2, [#allocation4], 64, 64, 4
    $region21: #{tpu_custom_call.1} parent=1 // pred_fallthru
      _
    // Predicated region
    $region22: #{tpu_custom_call.1} parent=1 // pred_check
      _
    $region23: #{tpu_custom_call.1} parent=1 // pred_check_branch
      %359 = sbr.rel (0) target = $region25
    $region24: #{tpu_custom_call.1} parent=1 // pred_region
      %360 = dma.done [#allocation4], 1024
    $region25: #{tpu_custom_call.1} parent=1 // pred_fallthru
      _
    %361 = vsyncpa [#allocation3], 1
    %362 = vsyncpa [#allocation6], 1
    %363 = vsyncpa [#allocation4], 1

</llo_original>
